<compile_context>
chip_gen: v5e
topology: v5e:2x2
jax: 0.10.0
libtpu: 0.0.40
codegen_flags: <defaults>
</compile_context>

<pallas_src>
import jax
import jax.numpy as jnp
from jax.experimental import pallas as pl
from jax.experimental.pallas import tpu as pltpu

_LANE = 128                     # one full vreg lane width; unmasked stores
_TINY_ELEMENTS = 512 * 1024     # below this, XLA's fused add wins outright
_MIN_GRID_STEPS = 4             # >= 2 blocks per v7x TensorCore for pipelining


def _double_kernel(x_ref, o_ref):
    # Hot path: pure VPU elementwise doubling of one lane-dense VMEM tile.
    x = x_ref[...]
    o_ref[...] = x + x


def _min_sublanes(dtype) -> int:
    # Sub-32-bit dtypes pack along sublanes: 8 rows f32, 16 bf16, 32 int8/fp8.
    return {4: 8, 2: 16, 1: 32}.get(jnp.dtype(dtype).itemsize, 8)


def _round_up(x: int, m: int) -> int:
    return ((x + m - 1) // m) * m


def _generation_params():
    """Returns (target_block_bytes, vmem_limit_bytes) for the local TPU."""
    try:
        kind = jax.devices()[0].device_kind.lower()
    except Exception:
        kind = ""
    if "v7" in kind:
        # 64 MiB VMEM/TC, 3.2 TB/s HBM: 8 MiB blocks; 2x(in+out) = 32 MiB buffers.
        return 8 << 20, 44 << 20
    if "v6" in kind:
        # 128 MiB VMEM, ~1.4 TB/s HBM: 8 MiB blocks with plenty of headroom.
        return 8 << 20, 64 << 20
    # v5e (0.82 TB/s) and unknown chips: 4 MiB blocks already amortize the
    # ~0.35 us/step grid overhead; 32 MiB limit needed (default scoped = 16 MiB).
    return 4 << 20, 32 << 20


def module4_forward(foo: jax.Array, *, tiny_threshold: int = _TINY_ELEMENTS) -> jax.Array:
    """Pallas implementation of Module4.forward: returns foo + foo."""
    orig_shape = foo.shape
    dtype = foo.dtype
    total = foo.size
    itemsize = jnp.dtype(dtype).itemsize
    min_sub = _min_sublanes(dtype)

    # Fallbacks (all hit XLA's fused elementwise add, already at HBM roofline):
    #  * tiny inputs: launch + pipeline prologue/epilogue is pure loss,
    #  * ragged totals (not a multiple of 128): avoids jnp.pad + output-slice
    #    round trips that would add two full extra HBM passes,
    #  * >32-bit dtypes: tiling assumptions don't apply.
    if total < tiny_threshold or total % _LANE != 0 or itemsize > 4:
        return foo + foo

    rows = total // _LANE
    x2d = foo.reshape(rows, _LANE)  # free: contiguous row-major view

    target_block, vmem_limit = _generation_params()
    row_bytes = _LANE * itemsize

    # Largest tm (multiple of min_sub) under the block-byte target ...
    cap_bytes = max(min_sub, (target_block // row_bytes) // min_sub * min_sub)
    # ... but small enough to leave >= _MIN_GRID_STEPS steps in the grid.
    cap_grid = max(min_sub, _round_up(pl.cdiv(rows, _MIN_GRID_STEPS), min_sub))
    tm = min(cap_bytes, cap_grid)

    # cdiv grid: Pallas masks the partial last block (safe for elementwise).
    grid = (pl.cdiv(rows, tm),)

    out2d = pl.pallas_call(
        _double_kernel,
        out_shape=jax.ShapeDtypeStruct((rows, _LANE), dtype),
        grid_spec=pltpu.PrefetchScalarGridSpec(
            num_scalar_prefetch=0,
            grid=grid,
            in_specs=[pl.BlockSpec((tm, _LANE), lambda i: (i, 0))],
            out_specs=pl.BlockSpec((tm, _LANE), lambda i: (i, 0)),
        ),
        compiler_params=pltpu.CompilerParams(
            dimension_semantics=("parallel",),
            vmem_limit_bytes=vmem_limit,
        ),
    )(x2d)

    return out2d.reshape(orig_shape)


if __name__ == "__main__":
    key = jax.random.PRNGKey(0)
    k1, k2, k3, k4, k5 = jax.random.split(key, 5)

    cases = [
        # Original test shape: tiny path -> plain fused add (no kernel launch).
        (jax.random.normal(k1, (2, 4, 16, 16), dtype=jnp.float32), {}),
        # Ragged total (not a multiple of 128): XLA fallback path, no pad/slice.
        (jax.random.normal(k2, (3, 50, 7, 100), dtype=jnp.float32), {}),
        # Force the Pallas path on modest arrays (tiny_threshold=0) so the
        # kernel itself is exercised without allocating huge test inputs.
        (jax.random.normal(k3, (8, 8, 32, 128), dtype=jnp.float32),
         {"tiny_threshold": 0}),
        # bf16: dtype-aware (16-sublane) tiling.
        (jax.random.normal(k4, (4, 8, 64, 128), dtype=jnp.float32).astype(jnp.bfloat16),
         {"tiny_threshold": 0}),
        # rows=1000 (not a multiple of tm): exercises the cdiv-masked last block.
        (jax.random.normal(k5, (5, 200, 128), dtype=jnp.float32),
         {"tiny_threshold": 0}),
    ]

    for foo, kwargs in cases:
        result = module4_forward(foo, **kwargs)
        jax.block_until_ready(result)
        expected = foo + foo
        assert result.shape == foo.shape, (result.shape, foo.shape)
        assert result.dtype == foo.dtype, (result.dtype, foo.dtype)
        assert jnp.allclose(result, expected), "mismatch vs reference"

    print("KERNEL_OK")
</pallas_src>

<mosaic_0001>
module attributes {stable_mosaic.version = 11 : i64} {
  func.func @_double_kernel(%arg0: i32, %arg1: memref<512x128xf32, #tpu.memory_space<vmem>>, %arg2: memref<512x128xf32, #tpu.memory_space<vmem>>) attributes {dimension_semantics = [#tpu.dimension_semantics<parallel>], iteration_bounds = array<i64: 4>, scalar_prefetch = 0 : i64, scratch_operands = 0 : i64, tpu.core_type = #tpu.core_type<tc>, window_params = [{transform_indices = @transform_0, window_bounds = array<i64: 512, 128>}, {transform_indices = @transform_1, window_bounds = array<i64: 512, 128>}]} {
    %c0 = arith.constant 0 : index
    %c0_0 = arith.constant 0 : index
    %0 = vector.load %arg1[%c0, %c0_0] : memref<512x128xf32, #tpu.memory_space<vmem>>, vector<512x128xf32>
    %1 = arith.addf %0, %0 : vector<512x128xf32>
    %c0_1 = arith.constant 0 : index
    %c0_2 = arith.constant 0 : index
    %2 = vector.load %arg2[%c0_1, %c0_2] : memref<512x128xf32, #tpu.memory_space<vmem>>, vector<512x128xf32>
    tpu.vector_store %arg2[%c0_1, %c0_2], %1 {strides = array<i32>} : memref<512x128xf32, #tpu.memory_space<vmem>>, vector<512x128xf32>,
    return
  }
  func.func @transform_0(%arg0: i32) -> (i32, i32) {
    %c0_i32 = arith.constant 0 : i32
    %c0_i32_0 = arith.constant 0 : i32
    return %arg0, %c0_i32 : i32, i32
  }
  func.func @transform_1(%arg0: i32) -> (i32, i32) {
    %c0_i32 = arith.constant 0 : i32
    %c0_i32_0 = arith.constant 0 : i32
    return %arg0, %c0_i32 : i32, i32
  }
}

</mosaic_0001>

<llo_original>
// kernel: tpu_custom_call.1
$region0: #{tpu_custom_call.1}
  #allocation0 [shape = 'u32[]', space=smem, size = 0x4, offset = 0x4, fixed_abs, tag = 'smem constant byte address 0x4 - core index']
  #allocation1 [shape = 'u32[72,128]{1,0:T(1,128)}', space=vmem, size = 0x9000, scoped, tag = 'internal scratch']
  %s0 = inlined_call_operand.hbm [shape: f32[2048,128], index: 0, kind: input, shape index: {}]
  %s1 = inlined_call_operand.hbm [shape: f32[2048,128], index: 1, kind: output, shape index: {}]
  %s2 = sld [smem:[#allocation0]]
  $region41: #{tpu_custom_call.1} parent=0
    _
  %s4 = ssub.s32 1, %s2
  %s5 = scalar_select 0, %s4, %s2
  $region1: #{tpu_custom_call.1} parent=0
    #allocation2 [shape = 'u8[524288]{0}', space=vmem, size = 0x80000, scoped, tag = 'input window, operand 0']
    #allocation3 [shape = 's32[2]{0}', space=sflag, size = 0x8, scoped, tag = 'scoped memory for tpu_custom_call.1']
    #allocation4 [shape = 's32[2]{0}', space=sflag, size = 0x8, scoped, tag = 'scoped memory for tpu_custom_call.1']
    #allocation5 [shape = 'u8[524288]{0}', space=vmem, size = 0x80000, scoped, tag = 'output window, operand 0']
    %6 = vsyncpa [#allocation3], 0
    %s7 = scalar_lea.sflag [#allocation3], 1
    %8 = vsyncpa %s7, 0
    %9 = vsyncpa [#allocation4], 0
    %s10 = scalar_lea.sflag [#allocation4], 1
    %11 = vsyncpa %s10, 0
    loop: start=0, step=1, limit=6
    $region2: #{tpu_custom_call.1} parent=1 // loop_pre_header
      _
    $region3: #{tpu_custom_call.1} parent=1 // loop_header
      %s13 = sphi 0, %s17
      %p14 = scmp.ge.s32.totalorder %s13, 6
      %s23 = sphi 0, %s25
      %s26 = sphi 0, %s23
      %s27 = sphi 0, %s26
      %s43 = sphi 0, %s27
      %s49 = sphi 0, %s51
      %s52 = sphi 0, %s49
      %s53 = sphi 0, %s52
      %s69 = sphi 0, %s53
    $region4: #{tpu_custom_call.1} parent=1 // loop_header_branch
      %16 = sbr.rel (%p14) target = $region8
    $region5: #{tpu_custom_call.1} parent=1 // loop_body
      %s18 = ssub.s32 %s13, 1
      %s19 = ssub.s32 %s13, 2
      %s20 = sadd.s32 %s13, 1
      %s21 = ssub.s32 %s13, %s20
      %p22 = scmp.eq.s32.totalorder %s21, 0
      %s24 = sadd.s32 %s23, 1
      %s25 = scalar_select %p22, %s23, %s24
      %p28 = pneg %p22
      %p29 = scmp.eq.s32.totalorder %s13, 3
      %p30 = por %p28, %p29
      %p31 = scmp.ne.s32.totalorder %s23, %s26
      %p32 = scmp.eq.s32.totalorder %s13, 0
      %p33 = por %p31, %p32
      %p34 = scmp.ne.s32.totalorder %s23, %s26
      %p35 = scmp.eq.s32.totalorder %s18, 3
      %p36 = por %p34, %p35
      %p37 = scmp.ne.s32.totalorder %s26, %s27
      %p38 = scmp.eq.s32.totalorder %s18, 0
      %p39 = por %p37, %p38
      %p40 = scmp.ne.s32.totalorder %s26, %s27
      %p41 = scmp.eq.s32.totalorder %s19, 3
      %p42 = por %p40, %p41
      %p44 = scmp.ne.s32.totalorder %s27, %s43
      %p45 = scmp.eq.s32.totalorder %s19, 0
      %p46 = por %p44, %p45
      %s47 = ssub.s32 %s13, %s20
      %p48 = scmp.eq.s32.totalorder %s47, 0
      %s50 = sadd.s32 %s49, 1
      %s51 = scalar_select %p48, %s49, %s50
      %p54 = pneg %p48
      %p55 = scmp.eq.s32.totalorder %s13, 3
      %p56 = por %p54, %p55
      %p57 = scmp.ne.s32.totalorder %s49, %s52
      %p58 = scmp.eq.s32.totalorder %s13, 0
      %p59 = por %p57, %p58
      %p60 = scmp.ne.s32.totalorder %s49, %s52
      %p61 = scmp.eq.s32.totalorder %s18, 3
      %p62 = por %p60, %p61
      %p63 = scmp.ne.s32.totalorder %s52, %s53
      %p64 = scmp.eq.s32.totalorder %s18, 0
      %p65 = por %p63, %p64
      %p66 = scmp.ne.s32.totalorder %s52, %s53
      %p67 = scmp.eq.s32.totalorder %s19, 3
      %p68 = por %p66, %p67
      %p70 = scmp.ne.s32.totalorder %s53, %s69
      %p71 = scmp.eq.s32.totalorder %s19, 0
      %p72 = por %p70, %p71
      %p73 = scmp.le.s32.totalorder 1, %s13
      %p74 = scmp.lt.s32.totalorder %s13, 5
      %p75 = pnand %p73, %p74
      %p76 = pneg %p75
      // Predicated region
      $region9: #{tpu_custom_call.1} parent=5 // pred_check
        _
      $region10: #{tpu_custom_call.1} parent=5 // pred_check_branch
        %78 = sbr.rel (%p75) target = $region12
      $region11: #{tpu_custom_call.1} parent=5 // pred_region
        %s79 = ssub.s32 %s13, 1
      $region12: #{tpu_custom_call.1} parent=5 // pred_fallthru
        _
      %p80 = scmp.lt.s32.totalorder %s13, 4
      // Predicated region
      $region13: #{tpu_custom_call.1} parent=5 // pred_check
        %p81 = pneg %p80
      $region14: #{tpu_custom_call.1} parent=5 // pred_check_branch
        %83 = sbr.rel (%p81) target = $region16
      $region15: #{tpu_custom_call.1} parent=5 // pred_region
        // Predicated region
        $region17: #{tpu_custom_call.1} parent=15 // pred_check
          %p84 = pneg %p33
        $region18: #{tpu_custom_call.1} parent=15 // pred_check_branch
          %86 = sbr.rel (%p84) target = $region20
        $region19: #{tpu_custom_call.1} parent=15 // pred_region
          %s87 = sand.u32 %s23, 1
          %s88 = scalar_lea.sflag [#allocation3], %s87
          %s89 = sand.u32 %s23, 1
          %s90 = smul.addr %s89, 512
          %s91 = scalar_lea.vmem [#allocation2], %s90
          %s92 = smul.u32 64, %s13
          %94 = vsyncadd %s88, 0
          %s95 = smul.addr %s92, 8
          %s96 = scalar_lea.hbm %s0, %s95
          %s97 = sshll.u32 %s96, 4
          %s98 = int_to_ptr.hbm [resolvable:$true] %s97
          %s99 = sshll.u32 %s91, 4
          %s100 = int_to_ptr.vmem [resolvable:$true] %s99
          %105 = dma.hbm_to_vmem [thread:$0]  %s98, 8192, %s100, %s88, 128, 128, 8
        $region20: #{tpu_custom_call.1} parent=15 // pred_fallthru
          _
      $region16: #{tpu_custom_call.1} parent=5 // pred_fallthru
        _
      %p106 = scmp.le.s32.totalorder 1, %s13
      %p107 = scmp.lt.s32.totalorder %s13, 5
      %p108 = pnand %p106, %p107
      %p109 = pneg %p108
      // Predicated region
      $region21: #{tpu_custom_call.1} parent=5 // pred_check
        _
      $region22: #{tpu_custom_call.1} parent=5 // pred_check_branch
        %111 = sbr.rel (%p108) target = $region24
      $region23: #{tpu_custom_call.1} parent=5 // pred_region
        %s112 = ssub.s32 %s13, 1
        %s113 = sand.u32 %s26, 1
        %s114 = scalar_lea.sflag [#allocation3], %s113
        %s115 = sand.u32 %s26, 1
        %s116 = smul.addr %s115, 512
        %s117 = scalar_lea.vmem [#allocation2], %s116
        // Predicated region
        $region25: #{tpu_custom_call.1} parent=23 // pred_check
          %p118 = pneg %p39
        $region26: #{tpu_custom_call.1} parent=23 // pred_check_branch
          %120 = sbr.rel (%p118) target = $region28
        $region27: #{tpu_custom_call.1} parent=23 // pred_region
          %122 = dma.done %s114, 8192
        $region28: #{tpu_custom_call.1} parent=23 // pred_fallthru
          _
        %s123 = sand.u32 %s26, 1
        %s124 = scalar_lea.sflag [#allocation3], %s123
        %s125 = sand.u32 %s26, 1
        %s126 = smul.addr %s125, 512
        %s127 = scalar_lea.vmem [#allocation2], %s126
        %p128 = pneg %p39
        %p129 = pneg %p36
        %p130 = pneg %p65
        %p131 = pneg %p62
        %s132 = sand.u32 %s52, 1
        %s133 = scalar_lea.sflag [#allocation4], %s132
        %s134 = sand.u32 %s52, 1
        %s135 = smul.addr %s134, 512
        %s136 = scalar_lea.vmem [#allocation5], %s135
        %s137 = smul.u32 64, %s18
        %s138 = smul.u32 64, %s18
        %v139 = vld [vmem:[%s117] sm:$0xff]
        %v140 = vld [vmem:[%s117 + $0x8] sm:$0xff]
        %v141 = vld [vmem:[%s117 + $0x10] sm:$0xff]
        %v142 = vld [vmem:[%s117 + $0x18] sm:$0xff]
        %v143 = vld [vmem:[%s117 + $0x20] sm:$0xff]
        %v144 = vld [vmem:[%s117 + $0x28] sm:$0xff]
        %v145 = vld [vmem:[%s117 + $0x30] sm:$0xff]
        %v146 = vld [vmem:[%s117 + $0x38] sm:$0xff]
        %v147 = vld [vmem:[%s117 + $0x40] sm:$0xff]
        %v148 = vld [vmem:[%s117 + $0x48] sm:$0xff]
        %v149 = vld [vmem:[%s117 + $0x50] sm:$0xff]
        %v150 = vld [vmem:[%s117 + $0x58] sm:$0xff]
        %v151 = vld [vmem:[%s117 + $0x60] sm:$0xff]
        %v152 = vld [vmem:[%s117 + $0x68] sm:$0xff]
        %v153 = vld [vmem:[%s117 + $0x70] sm:$0xff]
        %v154 = vld [vmem:[%s117 + $0x78] sm:$0xff]
        %v155 = vld [vmem:[%s117 + $0x80] sm:$0xff]
        %v156 = vld [vmem:[%s117 + $0x88] sm:$0xff]
        %v157 = vld [vmem:[%s117 + $0x90] sm:$0xff]
        %v158 = vld [vmem:[%s117 + $0x98] sm:$0xff]
        %v159 = vld [vmem:[%s117 + $0xa0] sm:$0xff]
        %v160 = vld [vmem:[%s117 + $0xa8] sm:$0xff]
        %v161 = vld [vmem:[%s117 + $0xb0] sm:$0xff]
        %v162 = vld [vmem:[%s117 + $0xb8] sm:$0xff]
        %v163 = vld [vmem:[%s117 + $0xc0] sm:$0xff]
        %v164 = vld [vmem:[%s117 + $0xc8] sm:$0xff]
        %v165 = vld [vmem:[%s117 + $0xd0] sm:$0xff]
        %v166 = vld [vmem:[%s117 + $0xd8] sm:$0xff]
        %v167 = vld [vmem:[%s117 + $0xe0] sm:$0xff]
        %v168 = vld [vmem:[%s117 + $0xe8] sm:$0xff]
        %v169 = vld [vmem:[%s117 + $0xf0] sm:$0xff]
        %v170 = vld [vmem:[%s117 + $0xf8] sm:$0xff]
        %v171 = vld [vmem:[%s117 + $0x100] sm:$0xff]
        %v172 = vld [vmem:[%s117 + $0x108] sm:$0xff]
        %v173 = vld [vmem:[%s117 + $0x110] sm:$0xff]
        %v174 = vld [vmem:[%s117 + $0x118] sm:$0xff]
        %v175 = vld [vmem:[%s117 + $0x120] sm:$0xff]
        %v176 = vld [vmem:[%s117 + $0x128] sm:$0xff]
        %v177 = vld [vmem:[%s117 + $0x130] sm:$0xff]
        %v178 = vld [vmem:[%s117 + $0x138] sm:$0xff]
        %v179 = vld [vmem:[%s117 + $0x140] sm:$0xff]
        %v180 = vld [vmem:[%s117 + $0x148] sm:$0xff]
        %v181 = vld [vmem:[%s117 + $0x150] sm:$0xff]
        %v182 = vld [vmem:[%s117 + $0x158] sm:$0xff]
        %v183 = vld [vmem:[%s117 + $0x160] sm:$0xff]
        %v184 = vld [vmem:[%s117 + $0x168] sm:$0xff]
        %v185 = vld [vmem:[%s117 + $0x170] sm:$0xff]
        %v186 = vld [vmem:[%s117 + $0x178] sm:$0xff]
        %v187 = vld [vmem:[%s117 + $0x180] sm:$0xff]
        %v188 = vld [vmem:[%s117 + $0x188] sm:$0xff]
        %v189 = vld [vmem:[%s117 + $0x190] sm:$0xff]
        %v190 = vld [vmem:[%s117 + $0x198] sm:$0xff]
        %v191 = vld [vmem:[%s117 + $0x1a0] sm:$0xff]
        %v192 = vld [vmem:[%s117 + $0x1a8] sm:$0xff]
        %v193 = vld [vmem:[%s117 + $0x1b0] sm:$0xff]
        %v194 = vld [vmem:[%s117 + $0x1b8] sm:$0xff]
        %v195 = vld [vmem:[%s117 + $0x1c0] sm:$0xff]
        %v196 = vld [vmem:[%s117 + $0x1c8] sm:$0xff]
        %v197 = vld [vmem:[%s117 + $0x1d0] sm:$0xff]
        %v198 = vld [vmem:[%s117 + $0x1d8] sm:$0xff]
        %v199 = vld [vmem:[%s117 + $0x1e0] sm:$0xff]
        %v200 = vld [vmem:[%s117 + $0x1e8] sm:$0xff]
        %v201 = vld [vmem:[%s117 + $0x1f0] sm:$0xff]
        %v202 = vld [vmem:[%s117 + $0x1f8] sm:$0xff]
        %v203 = vadd.f32 %v139, %v139
        %v204 = vadd.f32 %v140, %v140
        %v205 = vadd.f32 %v141, %v141
        %v206 = vadd.f32 %v142, %v142
        %v207 = vadd.f32 %v143, %v143
        %v208 = vadd.f32 %v144, %v144
        %v209 = vadd.f32 %v145, %v145
        %v210 = vadd.f32 %v146, %v146
        %v211 = vadd.f32 %v147, %v147
        %v212 = vadd.f32 %v148, %v148
        %v213 = vadd.f32 %v149, %v149
        %v214 = vadd.f32 %v150, %v150
        %v215 = vadd.f32 %v151, %v151
        %v216 = vadd.f32 %v152, %v152
        %v217 = vadd.f32 %v153, %v153
        %v218 = vadd.f32 %v154, %v154
        %v219 = vadd.f32 %v155, %v155
        %v220 = vadd.f32 %v156, %v156
        %v221 = vadd.f32 %v157, %v157
        %v222 = vadd.f32 %v158, %v158
        %v223 = vadd.f32 %v159, %v159
        %v224 = vadd.f32 %v160, %v160
        %v225 = vadd.f32 %v161, %v161
        %v226 = vadd.f32 %v162, %v162
        %v227 = vadd.f32 %v163, %v163
        %v228 = vadd.f32 %v164, %v164
        %v229 = vadd.f32 %v165, %v165
        %v230 = vadd.f32 %v166, %v166
        %v231 = vadd.f32 %v167, %v167
        %v232 = vadd.f32 %v168, %v168
        %v233 = vadd.f32 %v169, %v169
        %v234 = vadd.f32 %v170, %v170
        %v235 = vadd.f32 %v171, %v171
        %v236 = vadd.f32 %v172, %v172
        %v237 = vadd.f32 %v173, %v173
        %v238 = vadd.f32 %v174, %v174
        %v239 = vadd.f32 %v175, %v175
        %v240 = vadd.f32 %v176, %v176
        %v241 = vadd.f32 %v177, %v177
        %v242 = vadd.f32 %v178, %v178
        %v243 = vadd.f32 %v179, %v179
        %v244 = vadd.f32 %v180, %v180
        %v245 = vadd.f32 %v181, %v181
        %v246 = vadd.f32 %v182, %v182
        %v247 = vadd.f32 %v183, %v183
        %v248 = vadd.f32 %v184, %v184
        %v249 = vadd.f32 %v185, %v185
        %v250 = vadd.f32 %v186, %v186
        %v251 = vadd.f32 %v187, %v187
        %v252 = vadd.f32 %v188, %v188
        %v253 = vadd.f32 %v189, %v189
        %v254 = vadd.f32 %v190, %v190
        %v255 = vadd.f32 %v191, %v191
        %v256 = vadd.f32 %v192, %v192
        %v257 = vadd.f32 %v193, %v193
        %v258 = vadd.f32 %v194, %v194
        %v259 = vadd.f32 %v195, %v195
        %v260 = vadd.f32 %v196, %v196
        %v261 = vadd.f32 %v197, %v197
        %v262 = vadd.f32 %v198, %v198
        %v263 = vadd.f32 %v199, %v199
        %v264 = vadd.f32 %v200, %v200
        %v265 = vadd.f32 %v201, %v201
        %v266 = vadd.f32 %v202, %v202
        %267 = vst [vmem:[%s136] sm:$0xff] %v203
        %268 = vst [vmem:[%s136 + $0x8] sm:$0xff] %v204
        %269 = vst [vmem:[%s136 + $0x10] sm:$0xff] %v205
        %270 = vst [vmem:[%s136 + $0x18] sm:$0xff] %v206
        %271 = vst [vmem:[%s136 + $0x20] sm:$0xff] %v207
        %272 = vst [vmem:[%s136 + $0x28] sm:$0xff] %v208
        %273 = vst [vmem:[%s136 + $0x30] sm:$0xff] %v209
        %274 = vst [vmem:[%s136 + $0x38] sm:$0xff] %v210
        %275 = vst [vmem:[%s136 + $0x40] sm:$0xff] %v211
        %276 = vst [vmem:[%s136 + $0x48] sm:$0xff] %v212
        %277 = vst [vmem:[%s136 + $0x50] sm:$0xff] %v213
        %278 = vst [vmem:[%s136 + $0x58] sm:$0xff] %v214
        %279 = vst [vmem:[%s136 + $0x60] sm:$0xff] %v215
        %280 = vst [vmem:[%s136 + $0x68] sm:$0xff] %v216
        %281 = vst [vmem:[%s136 + $0x70] sm:$0xff] %v217
        %282 = vst [vmem:[%s136 + $0x78] sm:$0xff] %v218
        %283 = vst [vmem:[%s136 + $0x80] sm:$0xff] %v219
        %284 = vst [vmem:[%s136 + $0x88] sm:$0xff] %v220
        %285 = vst [vmem:[%s136 + $0x90] sm:$0xff] %v221
        %286 = vst [vmem:[%s136 + $0x98] sm:$0xff] %v222
        %287 = vst [vmem:[%s136 + $0xa0] sm:$0xff] %v223
        %288 = vst [vmem:[%s136 + $0xa8] sm:$0xff] %v224
        %289 = vst [vmem:[%s136 + $0xb0] sm:$0xff] %v225
        %290 = vst [vmem:[%s136 + $0xb8] sm:$0xff] %v226
        %291 = vst [vmem:[%s136 + $0xc0] sm:$0xff] %v227
        %292 = vst [vmem:[%s136 + $0xc8] sm:$0xff] %v228
        %293 = vst [vmem:[%s136 + $0xd0] sm:$0xff] %v229
        %294 = vst [vmem:[%s136 + $0xd8] sm:$0xff] %v230
        %295 = vst [vmem:[%s136 + $0xe0] sm:$0xff] %v231
        %296 = vst [vmem:[%s136 + $0xe8] sm:$0xff] %v232
        %297 = vst [vmem:[%s136 + $0xf0] sm:$0xff] %v233
        %298 = vst [vmem:[%s136 + $0xf8] sm:$0xff] %v234
        %299 = vst [vmem:[%s136 + $0x100] sm:$0xff] %v235
        %300 = vst [vmem:[%s136 + $0x108] sm:$0xff] %v236
        %301 = vst [vmem:[%s136 + $0x110] sm:$0xff] %v237
        %302 = vst [vmem:[%s136 + $0x118] sm:$0xff] %v238
        %303 = vst [vmem:[%s136 + $0x120] sm:$0xff] %v239
        %304 = vst [vmem:[%s136 + $0x128] sm:$0xff] %v240
        %305 = vst [vmem:[%s136 + $0x130] sm:$0xff] %v241
        %306 = vst [vmem:[%s136 + $0x138] sm:$0xff] %v242
        %307 = vst [vmem:[%s136 + $0x140] sm:$0xff] %v243
        %308 = vst [vmem:[%s136 + $0x148] sm:$0xff] %v244
        %309 = vst [vmem:[%s136 + $0x150] sm:$0xff] %v245
        %310 = vst [vmem:[%s136 + $0x158] sm:$0xff] %v246
        %311 = vst [vmem:[%s136 + $0x160] sm:$0xff] %v247
        %312 = vst [vmem:[%s136 + $0x168] sm:$0xff] %v248
        %313 = vst [vmem:[%s136 + $0x170] sm:$0xff] %v249
        %314 = vst [vmem:[%s136 + $0x178] sm:$0xff] %v250
        %315 = vst [vmem:[%s136 + $0x180] sm:$0xff] %v251
        %316 = vst [vmem:[%s136 + $0x188] sm:$0xff] %v252
        %317 = vst [vmem:[%s136 + $0x190] sm:$0xff] %v253
        %318 = vst [vmem:[%s136 + $0x198] sm:$0xff] %v254
        %319 = vst [vmem:[%s136 + $0x1a0] sm:$0xff] %v255
        %320 = vst [vmem:[%s136 + $0x1a8] sm:$0xff] %v256
        %321 = vst [vmem:[%s136 + $0x1b0] sm:$0xff] %v257
        %322 = vst [vmem:[%s136 + $0x1b8] sm:$0xff] %v258
        %323 = vst [vmem:[%s136 + $0x1c0] sm:$0xff] %v259
        %324 = vst [vmem:[%s136 + $0x1c8] sm:$0xff] %v260
        %325 = vst [vmem:[%s136 + $0x1d0] sm:$0xff] %v261
        %326 = vst [vmem:[%s136 + $0x1d8] sm:$0xff] %v262
        %327 = vst [vmem:[%s136 + $0x1e0] sm:$0xff] %v263
        %328 = vst [vmem:[%s136 + $0x1e8] sm:$0xff] %v264
        %329 = vst [vmem:[%s136 + $0x1f0] sm:$0xff] %v265
        %330 = vst [vmem:[%s136 + $0x1f8] sm:$0xff] %v266
        %s331 = sand.u32 %s52, 1
        %s332 = scalar_lea.sflag [#allocation4], %s331
        %s333 = sand.u32 %s52, 1
        %s334 = smul.addr %s333, 512
        %s335 = scalar_lea.vmem [#allocation5], %s334
        // Predicated region
        $region29: #{tpu_custom_call.1} parent=23 // pred_check
          %p336 = pneg %p62
        $region30: #{tpu_custom_call.1} parent=23 // pred_check_branch
          %338 = sbr.rel (%p336) target = $region32
        $region31: #{tpu_custom_call.1} parent=23 // pred_region
          %s339 = smul.u32 64, %s18
          %341 = vsyncadd %s332, 0
          %s342 = smul.addr %s339, 8
          %s343 = scalar_lea.hbm %s1, %s342
          %s344 = sshll.u32 %s335, 4
          %s345 = int_to_ptr.vmem [resolvable:$true] %s344
          %s346 = sshll.u32 %s343, 4
          %s347 = int_to_ptr.hbm [resolvable:$true] %s346
          %352 = dma.vmem_to_hbm [thread:$0]  %s345, 8192, %s347, %s332, 128, 128, 8
        $region32: #{tpu_custom_call.1} parent=23 // pred_fallthru
          _
      $region24: #{tpu_custom_call.1} parent=5 // pred_fallthru
        _
      %p353 = scmp.le.s32.totalorder 2, %s13
      // Predicated region
      $region33: #{tpu_custom_call.1} parent=5 // pred_check
        %p354 = pneg %p353
      $region34: #{tpu_custom_call.1} parent=5 // pred_check_branch
        %356 = sbr.rel (%p354) target = $region36
      $region35: #{tpu_custom_call.1} parent=5 // pred_region
        %s357 = ssub.s32 %s13, 2
        // Predicated region
        $region37: #{tpu_custom_call.1} parent=35 // pred_check
          %p358 = pneg %p68
        $region38: #{tpu_custom_call.1} parent=35 // pred_check_branch
          %360 = sbr.rel (%p358) target = $region40
        $region39: #{tpu_custom_call.1} parent=35 // pred_region
          %s361 = sand.u32 %s53, 1
          %s362 = scalar_lea.sflag [#allocation4], %s361
          %s363 = sand.u32 %s53, 1
          %s364 = smul.addr %s363, 512
          %s365 = scalar_lea.vmem [#allocation5], %s364
          %367 = dma.done %s362, 8192
        $region40: #{tpu_custom_call.1} parent=35 // pred_fallthru
          _
      $region36: #{tpu_custom_call.1} parent=5 // pred_fallthru
        _
    $region6: #{tpu_custom_call.1} parent=1 // loop_footer
      %s17 = sadd.s32 1, %s13
    $region7: #{tpu_custom_call.1} parent=1 // loop_footer_branch
      %12 = sbr.rel target = $region3
    $region8: #{tpu_custom_call.1} parent=1 // loop_exit
      _
    %368 = vsyncpa [#allocation3], 1
    %s369 = scalar_lea.sflag [#allocation3], 1
    %370 = vsyncpa %s369, 1
    %371 = vsyncpa [#allocation4], 1
    %s372 = scalar_lea.sflag [#allocation4], 1
    %373 = vsyncpa %s372, 1

</llo_original>
